<compile_context>
chip_gen: v5e
topology: v5e:2x2
jax: 0.10.0
libtpu: 0.0.40
codegen_flags: <defaults>
</compile_context>

<pallas_src>
import functools

import jax
import jax.numpy as jnp
from jax.experimental import pallas as pl
from jax.experimental.pallas import tpu as pltpu


def _round_up(x: int, m: int) -> int:
    return ((x + m - 1) // m) * m


def mylinear_kernel(x_ref, w_ref, b_ref, o_ref, acc_ref):
    k = pl.program_id(2)

    @pl.when(k == 0)
    def _init():
        acc_ref[...] = jnp.zeros_like(acc_ref)

    # Hot loop: MXU matmul only. bf16 inputs, f32 accumulation.
    acc_ref[...] += jnp.dot(
        x_ref[...].astype(jnp.bfloat16),
        w_ref[...].astype(jnp.bfloat16),
        preferred_element_type=jnp.float32,
    )

    @pl.when(k == pl.num_programs(2) - 1)
    def _finalize():
        # Bias broadcast over rows + ReLU, done exactly once per output tile.
        o_ref[...] = jnp.maximum(acc_ref[...] + b_ref[...], 0.0).astype(o_ref.dtype)


@functools.partial(jax.jit, static_argnames=("tm", "tn", "tk"))
def mylinear(x, weight, bias, *, tm: int = 256, tn: int = 256, tk: int = 512):
    B, K = x.shape
    K2, N = weight.shape
    assert K == K2 and bias.shape == (N,)

    # Clamp tiles to the (padded) problem size while keeping TPU layout
    # alignment: sublane dims multiple of 8, lane dims multiple of 128
    # (lane-dense output stores: tn is always a multiple of 128).
    tm = min(tm, _round_up(B, 8))
    tn = min(tn, _round_up(N, 128))
    tk = min(tk, _round_up(K, 128))

    Bp = _round_up(B, tm)
    Kp = _round_up(K, tk)
    Np = _round_up(N, tn)

    # Zero-pad: padded K columns contribute 0 to the dot; padded N/B rows/cols
    # are sliced off at the end (bias padded with 0 -> relu(0) = 0, discarded).
    x_p = jnp.pad(x, ((0, Bp - B), (0, Kp - K))) if (Bp != B or Kp != K) else x
    w_p = (
        jnp.pad(weight, ((0, Kp - K), (0, Np - N)))
        if (Kp != K or Np != N)
        else weight
    )
    b_p = jnp.pad(bias, (0, Np - N)) if Np != N else bias
    b_p = b_p.reshape(1, Np)  # 2-D bias for a clean (sublane, lane) layout

    grid = (Bp // tm, Np // tn, Kp // tk)

    out_p = pl.pallas_call(
        mylinear_kernel,
        out_shape=jax.ShapeDtypeStruct((Bp, Np), x.dtype),
        grid=grid,
        in_specs=[
            pl.BlockSpec((tm, tk), lambda i, j, k: (i, k)),  # X tile
            pl.BlockSpec((tk, tn), lambda i, j, k: (k, j)),  # W tile
            pl.BlockSpec((1, tn), lambda i, j, k: (0, j)),   # bias tile
        ],
        out_specs=pl.BlockSpec((tm, tn), lambda i, j, k: (i, j)),
        scratch_shapes=[pltpu.VMEM((tm, tn), jnp.float32)],
        compiler_params=pltpu.CompilerParams(
            dimension_semantics=("parallel", "parallel", "arbitrary"),
        ),
    )(x_p, w_p, b_p)

    return out_p[:B, :N]


if __name__ == "__main__":
    key = jax.random.PRNGKey(0)

    # Small demo shapes matching the module (single-tile path, N padded to 128).
    in_units, units, batch = 32, 64, 8
    kx, kw, kb = jax.random.split(key, 3)
    x = jax.random.uniform(kx, (batch, in_units), dtype=jnp.float32)
    weight = jax.random.uniform(kw, (in_units, units), dtype=jnp.float32)
    bias = jax.random.uniform(kb, (units,), dtype=jnp.float32)

    out = mylinear(x, weight, bias)
    jax.block_until_ready(out)
    ref = jnp.maximum(x @ weight + bias, 0.0)
    # bf16 MXU inputs with f32 accumulation -> compare at bf16-level tolerance.
    assert out.shape == ref.shape
    assert jnp.allclose(out, ref, atol=1e-2, rtol=2e-2), float(
        jnp.max(jnp.abs(out - ref))
    )

    # Second check: non-tile-multiple shapes exercising the multi-tile
    # (i, j, k) grid, the k-accumulator and the padding/slicing path.
    k2x, k2w, k2b = jax.random.split(jax.random.PRNGKey(1), 3)
    B2, K2, N2 = 300, 640, 320
    x2 = jax.random.uniform(k2x, (B2, K2), dtype=jnp.float32)
    w2 = jax.random.uniform(k2w, (K2, N2), dtype=jnp.float32)
    b2 = jax.random.uniform(k2b, (N2,), dtype=jnp.float32)
    out2 = mylinear(x2, w2, b2)
    jax.block_until_ready(out2)
    ref2 = jnp.maximum(x2 @ w2 + b2, 0.0)
    assert jnp.allclose(out2, ref2, atol=5e-2, rtol=2e-2), float(
        jnp.max(jnp.abs(out2 - ref2))
    )

    print("KERNEL_OK")
</pallas_src>

<mosaic_0001>
module attributes {stable_mosaic.version = 11 : i64} {
  func.func @mylinear_kernel(%arg0: i32, %arg1: i32, %arg2: i32, %arg3: memref<8x128xf32, #tpu.memory_space<vmem>>, %arg4: memref<128x128xf32, #tpu.memory_space<vmem>>, %arg5: memref<1x128xf32, #tpu.memory_space<vmem>>, %arg6: memref<8x128xf32, #tpu.memory_space<vmem>>, %arg7: memref<8x128xf32, #tpu.memory_space<vmem>>) attributes {dimension_semantics = [#tpu.dimension_semantics<parallel>, #tpu.dimension_semantics<parallel>, #tpu.dimension_semantics<arbitrary>], iteration_bounds = array<i64: 1, 1, 1>, scalar_prefetch = 0 : i64, scratch_operands = 1 : i64, tpu.core_type = #tpu.core_type<tc>, window_params = [{transform_indices = @transform_0, window_bounds = array<i64: 8, 128>}, {transform_indices = @transform_1, window_bounds = array<i64: 128, 128>}, {transform_indices = @transform_2, window_bounds = array<i64: 1, 128>}, {transform_indices = @transform_3, window_bounds = array<i64: 8, 128>}]} {
    %c0_i32 = arith.constant 0 : i32
    %0 = arith.cmpi eq, %arg2, %c0_i32 : i32
    %1 = arith.extui %0 : i1 to i32
    %c0_i32_0 = arith.constant 0 : i32
    %2 = arith.cmpi ne, %1, %c0_i32_0 : i32
    scf.if %2 {
      %cst_10 = arith.constant 0.000000e+00 : f32
      %14 = vector.broadcast %cst_10 : f32 to vector<8x128xf32>
      %c0_11 = arith.constant 0 : index
      %c0_12 = arith.constant 0 : index
      %15 = vector.load %arg7[%c0_11, %c0_12] : memref<8x128xf32, #tpu.memory_space<vmem>>, vector<8x128xf32>
      tpu.vector_store %arg7[%c0_11, %c0_12], %14 {strides = array<i32>} : memref<8x128xf32, #tpu.memory_space<vmem>>, vector<8x128xf32>,
    } else {
    }
    %c0 = arith.constant 0 : index
    %c0_1 = arith.constant 0 : index
    %3 = vector.load %arg7[%c0, %c0_1] : memref<8x128xf32, #tpu.memory_space<vmem>>, vector<8x128xf32>
    %c0_2 = arith.constant 0 : index
    %c0_3 = arith.constant 0 : index
    %4 = vector.load %arg3[%c0_2, %c0_3] : memref<8x128xf32, #tpu.memory_space<vmem>>, vector<8x128xf32>
    %5 = arith.truncf %4 : vector<8x128xf32> to vector<8x128xbf16>
    %c0_4 = arith.constant 0 : index
    %c0_5 = arith.constant 0 : index
    %6 = vector.load %arg4[%c0_4, %c0_5] : memref<128x128xf32, #tpu.memory_space<vmem>>, vector<128x128xf32>
    %7 = arith.truncf %6 : vector<128x128xf32> to vector<128x128xbf16>
    %cst = arith.constant dense<0.000000e+00> : vector<8x128xf32>
    %8 = tpu.matmul %5, %7, %cst {dimension_numbers = #tpu.dot_dimension_numbers<[1], [0], [0], [1], [0, 0, 1, 1], [], []>} : vector<8x128xbf16>, vector<128x128xbf16>, vector<8x128xf32> -> vector<8x128xf32>
    %9 = arith.addf %3, %8 : vector<8x128xf32>
    %c0_6 = arith.constant 0 : index
    %c0_7 = arith.constant 0 : index
    %10 = vector.load %arg7[%c0_6, %c0_7] : memref<8x128xf32, #tpu.memory_space<vmem>>, vector<8x128xf32>
    tpu.vector_store %arg7[%c0_6, %c0_7], %9 {strides = array<i32>} : memref<8x128xf32, #tpu.memory_space<vmem>>, vector<8x128xf32>,
    %c0_i32_8 = arith.constant 0 : i32
    %11 = arith.cmpi eq, %arg2, %c0_i32_8 : i32
    %12 = arith.extui %11 : i1 to i32
    %c0_i32_9 = arith.constant 0 : i32
    %13 = arith.cmpi ne, %12, %c0_i32_9 : i32
    scf.if %13 {
      %c0_10 = arith.constant 0 : index
      %c0_11 = arith.constant 0 : index
      %14 = vector.load %arg7[%c0_10, %c0_11] : memref<8x128xf32, #tpu.memory_space<vmem>>, vector<8x128xf32>
      %c0_12 = arith.constant 0 : index
      %c0_13 = arith.constant 0 : index
      %15 = vector.load %arg5[%c0_12, %c0_13] : memref<1x128xf32, #tpu.memory_space<vmem>>, vector<1x128xf32>
      %16 = vector.broadcast %15 : vector<1x128xf32> to vector<8x128xf32>
      %17 = arith.addf %14, %16 : vector<8x128xf32>
      %cst_14 = arith.constant 0.000000e+00 : f32
      %18 = vector.broadcast %cst_14 : f32 to vector<8x128xf32>
      %19 = arith.maximumf %17, %18 : vector<8x128xf32>
      %c0_15 = arith.constant 0 : index
      %c0_16 = arith.constant 0 : index
      %20 = vector.load %arg6[%c0_15, %c0_16] : memref<8x128xf32, #tpu.memory_space<vmem>>, vector<8x128xf32>
      tpu.vector_store %arg6[%c0_15, %c0_16], %19 {strides = array<i32>} : memref<8x128xf32, #tpu.memory_space<vmem>>, vector<8x128xf32>,
    } else {
    }
    return
  }
  func.func @transform_0(%arg0: i32, %arg1: i32, %arg2: i32) -> (i32, i32) {
    %c0_i32 = arith.constant 0 : i32
    return %arg0, %arg2 : i32, i32
  }
  func.func @transform_1(%arg0: i32, %arg1: i32, %arg2: i32) -> (i32, i32) {
    %c0_i32 = arith.constant 0 : i32
    return %arg2, %arg1 : i32, i32
  }
  func.func @transform_2(%arg0: i32, %arg1: i32, %arg2: i32) -> (i32, i32) {
    %c0_i32 = arith.constant 0 : i32
    %c0_i32_0 = arith.constant 0 : i32
    return %c0_i32, %arg1 : i32, i32
  }
  func.func @transform_3(%arg0: i32, %arg1: i32, %arg2: i32) -> (i32, i32) {
    %c0_i32 = arith.constant 0 : i32
    return %arg0, %arg1 : i32, i32
  }
}

</mosaic_0001>

<llo_original>
// kernel: mylinear.1
$region0: #{mylinear.1}
  #allocation0 [shape = 'u32[]', space=smem, size = 0x4, offset = 0x4, fixed_abs, tag = 'smem constant byte address 0x4 - core index']
  #allocation1 [shape = 'u32[72,128]{1,0:T(1,128)}', space=vmem, size = 0x9000, scoped, tag = 'internal scratch']
  #allocation2 [shape = 'f32[8,128]{1,0:T(8,128)}', space=vmem, size = 0x1000, scoped, tag = 'scratch operand']
  %s0 = inlined_call_operand.vmem [shape: f32[8,128], index: 0, kind: input, shape index: {}]
  %s1 = inlined_call_operand.vmem [shape: f32[128,128], index: 1, kind: input, shape index: {}]
  %s2 = inlined_call_operand.vmem [shape: f32[1,128], index: 2, kind: input, shape index: {}]
  %s3 = inlined_call_operand.hbm [shape: f32[8,128], index: 3, kind: output, shape index: {}]
  %s4 = sld [smem:[#allocation0]]
  $region30: #{mylinear.1} parent=0
    _
  %s6 = ssub.s32 1, %s4
  %s7 = scalar_select 0, %s6, %s4
  $region1: #{mylinear.1} parent=0
    #allocation3 [shape = 'u8[4096]{0}', space=vmem, size = 0x1000, scoped, tag = 'output window, operand 0, single buffered']
    #allocation4 [shape = 's32[1]{0}', space=sflag, size = 0x4, scoped, tag = 'scoped memory for mylinear.1']
    %8 = vsyncpa [#allocation4], 0
    // Predicated region
    $region2: #{mylinear.1} parent=1 // pred_check
      _
    $region3: #{mylinear.1} parent=1 // pred_check_branch
      %10 = sbr.rel (0) target = $region5
    $region4: #{mylinear.1} parent=1 // pred_region
      _
    $region5: #{mylinear.1} parent=1 // pred_fallthru
      _
    // Predicated region
    $region6: #{mylinear.1} parent=1 // pred_check
      _
    $region7: #{mylinear.1} parent=1 // pred_check_branch
      %12 = sbr.rel (0) target = $region9
    $region8: #{mylinear.1} parent=1 // pred_region
      _
    $region9: #{mylinear.1} parent=1 // pred_fallthru
      _
    // Predicated region
    $region10: #{mylinear.1} parent=1 // pred_check
      _
    $region11: #{mylinear.1} parent=1 // pred_check_branch
      %14 = sbr.rel (0) target = $region13
    $region12: #{mylinear.1} parent=1 // pred_region
      _
    $region13: #{mylinear.1} parent=1 // pred_fallthru
      _
    %p15 = scmp.eq.s32.totalorder 0, 0
    // Predicated region
    $region14: #{mylinear.1} parent=1 // pred_check
      %p16 = pneg %p15
    $region15: #{mylinear.1} parent=1 // pred_check_branch
      %18 = sbr.rel (%p16) target = $region17
    $region16: #{mylinear.1} parent=1 // pred_region
      %19 = vst [vmem:[#allocation2] sm:$0xff] 0.0
    $region17: #{mylinear.1} parent=1 // pred_fallthru
      _
    %v20 = vld [vmem:[#allocation2] sm:$0xff]
    %v21 = vld [vmem:[%s0] sm:$0xff]
    %v22 = vpack.c.bf16 %v21, %v21
    %v23 = vld [vmem:[%s1] sm:$0xff]
    %v24 = vld [vmem:[%s1 + $0x8] sm:$0xff]
    %v25 = vld [vmem:[%s1 + $0x10] sm:$0xff]
    %v26 = vld [vmem:[%s1 + $0x18] sm:$0xff]
    %v27 = vld [vmem:[%s1 + $0x20] sm:$0xff]
    %v28 = vld [vmem:[%s1 + $0x28] sm:$0xff]
    %v29 = vld [vmem:[%s1 + $0x30] sm:$0xff]
    %v30 = vld [vmem:[%s1 + $0x38] sm:$0xff]
    %v31 = vld [vmem:[%s1 + $0x40] sm:$0xff]
    %v32 = vld [vmem:[%s1 + $0x48] sm:$0xff]
    %v33 = vld [vmem:[%s1 + $0x50] sm:$0xff]
    %v34 = vld [vmem:[%s1 + $0x58] sm:$0xff]
    %v35 = vld [vmem:[%s1 + $0x60] sm:$0xff]
    %v36 = vld [vmem:[%s1 + $0x68] sm:$0xff]
    %v37 = vld [vmem:[%s1 + $0x70] sm:$0xff]
    %v38 = vld [vmem:[%s1 + $0x78] sm:$0xff]
    %v39 = vpack.c.bf16 %v24, %v23
    %v40 = vpack.c.bf16 %v26, %v25
    %v41 = vpack.c.bf16 %v28, %v27
    %v42 = vpack.c.bf16 %v30, %v29
    %v43 = vpack.c.bf16 %v32, %v31
    %v44 = vpack.c.bf16 %v34, %v33
    %v45 = vpack.c.bf16 %v36, %v35
    %v46 = vpack.c.bf16 %v38, %v37
    %47 = vmatpush.bf16.msra.mxu0 %v46
    %48 = vmatpush.bf16.msra.mxu0 %v45
    %49 = vmatpush.bf16.msra.mxu0 %v44
    %50 = vmatpush.bf16.msra.mxu0 %v43
    %51 = vmatpush.bf16.msra.mxu0 %v42
    %52 = vmatpush.bf16.msra.mxu0 %v41
    %53 = vmatpush.bf16.msra.mxu0 %v40
    %54 = vmatpush.bf16.msra.mxu0 %v39
    %55 = vmatmul.bf16.gmra.mxu0 %v22
    %v56 = vpop.f32.mrf.mxu0
    %v57 = vadd.f32 0.0, %v56
    %v58 = vpop.f32.mrf.mxu0
    %59 = vdwg.mxu0
    %v60 = vadd.f32 %v20, %v57
    %61 = vst [vmem:[#allocation2] sm:$0xff] %v60
    // Predicated region
    $region18: #{mylinear.1} parent=1 // pred_check
      %p62 = pneg %p15
    $region19: #{mylinear.1} parent=1 // pred_check_branch
      %64 = sbr.rel (%p62) target = $region21
    $region20: #{mylinear.1} parent=1 // pred_region
      %v65 = vld [vmem:[#allocation2] sm:$0xff]
      %v66 = vld [vmem:[%s2] sm:$0x1]
      %v68 = vperm.slane %v66, 0
      %v70 = vadd.f32 %v65, %v68
      %v71 = vmax.f32 %v70, 0.0
      %72 = vst [vmem:[#allocation3] sm:$0xff] %v71
    $region21: #{mylinear.1} parent=1 // pred_fallthru
      _
    // Predicated region
    $region22: #{mylinear.1} parent=1 // pred_check
      _
    $region23: #{mylinear.1} parent=1 // pred_check_branch
      %74 = sbr.rel (0) target = $region25
    $region24: #{mylinear.1} parent=1 // pred_region
      %76 = vsyncadd [#allocation4], 0
      %s78 = sshll.u32 [#allocation3], 4
      %s79 = int_to_ptr.vmem [resolvable:$true] %s78
      %s80 = sshll.u32 %s3, 4
      %s81 = int_to_ptr.hbm [resolvable:$true] %s80
      %83 = dma.vmem_to_hbm [thread:$0]  %s79, 128, %s81, [#allocation4]
    $region25: #{mylinear.1} parent=1 // pred_fallthru
      _
    // Predicated region
    $region26: #{mylinear.1} parent=1 // pred_check
      _
    $region27: #{mylinear.1} parent=1 // pred_check_branch
      %85 = sbr.rel (0) target = $region29
    $region28: #{mylinear.1} parent=1 // pred_region
      %87 = dma.done [#allocation4], 128
    $region29: #{mylinear.1} parent=1 // pred_fallthru
      _
    %88 = vsyncpa [#allocation4], 1

</llo_original>
